<compile_context>
chip_gen: v7x
topology: tpu7x:2x2x1
jax: 0.10.0
libtpu: 0.0.40
codegen_flags: <defaults>
</compile_context>

<pallas_src>
import math

import jax
import jax.numpy as jnp
from jax import lax
from jax.experimental import pallas as pl
from jax.experimental.pallas import tpu as pltpu

OUT_PAD = 8        # final layer padded from action_size=4 to 8 columns
CHUNK_ROWS = 256   # rows per in-kernel step (activations stay in vregs)
MAX_TILE_B = 2048  # max rows per grid step (per-DMA block)


def _round_up(x, m):
    return ((x + m - 1) // m) * m


def _choose_tile(b):
    """Rows per grid step: big enough to amortize the ~0.35us step cost,
    but >= 2 grid steps so a 2-TensorCore chip (v7x) can split the batch."""
    n_tiles = max(2, pl.cdiv(b, MAX_TILE_B))
    per_tile = pl.cdiv(b, n_tiles)
    align = CHUNK_ROWS if per_tile >= CHUNK_ROWS else 8
    return min(MAX_TILE_B, _round_up(per_tile, align))


def make_qnet_kernel(tile_b, chunk):
    """Fused 4-layer MLP kernel specialized to (tile_b, chunk)."""
    n_full = tile_b // chunk
    rem = tile_b - n_full * chunk  # 0 with the tile selection above; kept for safety

    def kernel(x_ref,
               w1_ref, b1_ref,
               w2_ref, b2_ref,
               w3_ref, b3_ref,
               w4_ref, b4_ref,
               o_ref):
        # Resident weights/biases: load once per grid step.
        w1, b1 = w1_ref[...], b1_ref[...]
        w2, b2 = w2_ref[...], b2_ref[...]
        w3, b3 = w3_ref[...], b3_ref[...]
        w4, b4 = w4_ref[...], b4_ref[...]

        def mlp(x):
            h = jnp.maximum(
                jnp.dot(x, w1, preferred_element_type=jnp.float32) + b1, 0.0)
            h = jnp.maximum(
                jnp.dot(h, w2, preferred_element_type=jnp.float32) + b2, 0.0)
            h = jnp.maximum(
                jnp.dot(h, w3, preferred_element_type=jnp.float32) + b3, 0.0)
            return jnp.dot(h, w4, preferred_element_type=jnp.float32) + b4

        if n_full > 0:
            def body(c, carry):
                r = pl.multiple_of(c * chunk, chunk)
                o_ref[pl.ds(r, chunk), :] = mlp(x_ref[pl.ds(r, chunk), :])
                return carry
            lax.fori_loop(0, n_full, body, 0, unroll=True)

        if rem > 0:
            r0 = n_full * chunk
            o_ref[pl.ds(r0, rem), :] = mlp(x_ref[pl.ds(r0, rem), :])

    return kernel


def qnetwork_forward(state, kernel_params, *, action_size=4):
    """state: (B, state_size) float32. kernel_params: params with w4/b4 padded to 8."""
    b, state_size = state.shape

    tile_b = _choose_tile(b)
    b_pad = pl.cdiv(b, tile_b) * tile_b
    if b_pad != b:
        state = jnp.pad(state, ((0, b_pad - b), (0, 0)))
    grid = (b_pad // tile_b,)

    p = kernel_params
    args = (state,
            p["w1"], p["b1"],
            p["w2"], p["b2"],
            p["w3"], p["b3"],
            p["w4"], p["b4"])

    # x / o pipelined over the batch grid; weights resident (constant block).
    x_spec = pl.BlockSpec((tile_b, state_size), lambda i: (i, 0))
    out_spec = pl.BlockSpec((tile_b, OUT_PAD), lambda i: (i, 0))

    def resident(arr):
        return pl.BlockSpec(arr.shape, lambda i: (0, 0))

    in_specs = [x_spec] + [resident(a) for a in args[1:]]

    chunk = min(CHUNK_ROWS, tile_b)
    kernel = make_qnet_kernel(tile_b, chunk)

    flops = 2 * b_pad * (state_size * 128 + 128 * 64 + 64 * 32 + 32 * OUT_PAD)
    bytes_accessed = (int(state.size) * 4
                      + sum(int(a.size) * 4 for a in args[1:])
                      + b_pad * OUT_PAD * 4)

    out_padded = pl.pallas_call(
        kernel,
        out_shape=jax.ShapeDtypeStruct((b_pad, OUT_PAD), jnp.float32),
        grid=grid,
        in_specs=in_specs,
        out_specs=out_spec,
        compiler_params=pltpu.CompilerParams(
            dimension_semantics=("parallel",)),
        cost_estimate=pl.CostEstimate(
            flops=flops, bytes_accessed=bytes_accessed, transcendentals=0),
    )(*args)

    return out_padded[:b, :action_size]


def init_linear(key, fan_in, fan_out):
    """Deterministic init mimicking nn.Linear's default U(-1/sqrt(fan_in), ...)."""
    kw, kb = jax.random.split(key)
    bound = 1.0 / math.sqrt(fan_in)
    # stored as (in, out) so the kernel computes x @ W + b
    w = jax.random.uniform(kw, (fan_in, fan_out), jnp.float32, -bound, bound)
    b = jax.random.uniform(kb, (1, fan_out), jnp.float32, -bound, bound)
    return w, b


def init_qnetwork_params(key, state_size=8, action_size=4):
    """Unpadded (PyTorch-equivalent) parameters."""
    k1, k2, k3, k4 = jax.random.split(key, 4)
    w1, b1 = init_linear(k1, state_size, 128)
    w2, b2 = init_linear(k2, 128, 64)
    w3, b3 = init_linear(k3, 64, 32)
    w4, b4 = init_linear(k4, 32, action_size)
    return {"w1": w1, "b1": b1,
            "w2": w2, "b2": b2,
            "w3": w3, "b3": b3,
            "w4": w4, "b4": b4}


def pad_params_for_kernel(params, action_size=4):
    """Only the final layer is padded (4 -> 8 output columns); padded weight
    columns and bias entries are zero, so extra Q-columns are exactly zero and
    are sliced off by the wrapper. Hidden layers keep natural widths."""
    w4 = jnp.pad(params["w4"], ((0, 0), (0, OUT_PAD - action_size)))
    b4 = jnp.pad(params["b4"], ((0, 0), (0, OUT_PAD - action_size)))
    return {**params, "w4": w4, "b4": b4}


def ref_forward(x, p):
    """Plain-JAX reference matching the PyTorch module."""
    h = jnp.maximum(x @ p["w1"] + p["b1"], 0.0)
    h = jnp.maximum(h @ p["w2"] + p["b2"], 0.0)
    h = jnp.maximum(h @ p["w3"] + p["b3"], 0.0)
    return h @ p["w4"] + p["b4"]


if __name__ == "__main__":
    key = jax.random.PRNGKey(0)
    k_params, k_state, k_state2 = jax.random.split(key, 3)

    state_size, action_size, batch = 8, 4, 8
    raw_params = init_qnetwork_params(k_params, state_size, action_size)
    kernel_params = pad_params_for_kernel(raw_params, action_size)

    # Small-batch check (single grid step, single chunk).
    state = jax.random.normal(k_state, (batch, state_size), jnp.float32)
    q_values = qnetwork_forward(state, kernel_params, action_size=action_size)
    q_values = jax.block_until_ready(q_values)
    ref = ref_forward(state, raw_params)
    assert q_values.shape == (batch, action_size)
    assert jnp.allclose(q_values, ref, atol=1e-5, rtol=1e-5)

    # Larger-batch check exercising multi-tile grid + unrolled chunk loop.
    batch2 = 1100
    state2 = jax.random.normal(k_state2, (batch2, state_size), jnp.float32)
    q2 = jax.block_until_ready(
        qnetwork_forward(state2, kernel_params, action_size=action_size))
    ref2 = ref_forward(state2, raw_params)
    assert q2.shape == (batch2, action_size)
    assert jnp.allclose(q2, ref2, atol=1e-5, rtol=1e-5)

    print("KERNEL_OK")
</pallas_src>

<mosaic_0001>
module attributes {stable_mosaic.version = 11 : i64} {
  func.func @kernel(%arg0: i32, %arg1: memref<8x8xf32, #tpu.memory_space<vmem>>, %arg2: memref<8x128xf32, #tpu.memory_space<vmem>>, %arg3: memref<1x128xf32, #tpu.memory_space<vmem>>, %arg4: memref<128x64xf32, #tpu.memory_space<vmem>>, %arg5: memref<1x64xf32, #tpu.memory_space<vmem>>, %arg6: memref<64x32xf32, #tpu.memory_space<vmem>>, %arg7: memref<1x32xf32, #tpu.memory_space<vmem>>, %arg8: memref<32x8xf32, #tpu.memory_space<vmem>>, %arg9: memref<1x8xf32, #tpu.memory_space<vmem>>, %arg10: memref<8x8xf32, #tpu.memory_space<vmem>>) attributes {dimension_semantics = [#tpu.dimension_semantics<parallel>], iteration_bounds = array<i64: 1>, scalar_prefetch = 0 : i64, scratch_operands = 0 : i64, tpu.core_type = #tpu.core_type<tc>, window_params = [{transform_indices = @transform_0, window_bounds = array<i64: 8, 8>}, {pipeline_mode = #tpu.pipeline_mode<synchronous>, transform_indices = @transform_1, window_bounds = array<i64: 8, 128>}, {pipeline_mode = #tpu.pipeline_mode<synchronous>, transform_indices = @transform_2, window_bounds = array<i64: 1, 128>}, {pipeline_mode = #tpu.pipeline_mode<synchronous>, transform_indices = @transform_3, window_bounds = array<i64: 128, 64>}, {pipeline_mode = #tpu.pipeline_mode<synchronous>, transform_indices = @transform_4, window_bounds = array<i64: 1, 64>}, {pipeline_mode = #tpu.pipeline_mode<synchronous>, transform_indices = @transform_5, window_bounds = array<i64: 64, 32>}, {pipeline_mode = #tpu.pipeline_mode<synchronous>, transform_indices = @transform_6, window_bounds = array<i64: 1, 32>}, {pipeline_mode = #tpu.pipeline_mode<synchronous>, transform_indices = @transform_7, window_bounds = array<i64: 32, 8>}, {pipeline_mode = #tpu.pipeline_mode<synchronous>, transform_indices = @transform_8, window_bounds = array<i64: 1, 8>}, {transform_indices = @transform_9, window_bounds = array<i64: 8, 8>}]} {
    %c0 = arith.constant 0 : index
    %c0_0 = arith.constant 0 : index
    %0 = vector.load %arg2[%c0, %c0_0] : memref<8x128xf32, #tpu.memory_space<vmem>>, vector<8x128xf32>
    %c0_1 = arith.constant 0 : index
    %c0_2 = arith.constant 0 : index
    %1 = vector.load %arg3[%c0_1, %c0_2] : memref<1x128xf32, #tpu.memory_space<vmem>>, vector<1x128xf32>
    %c0_3 = arith.constant 0 : index
    %c0_4 = arith.constant 0 : index
    %2 = vector.load %arg4[%c0_3, %c0_4] : memref<128x64xf32, #tpu.memory_space<vmem>>, vector<128x64xf32>
    %c0_5 = arith.constant 0 : index
    %c0_6 = arith.constant 0 : index
    %3 = vector.load %arg5[%c0_5, %c0_6] : memref<1x64xf32, #tpu.memory_space<vmem>>, vector<1x64xf32>
    %c0_7 = arith.constant 0 : index
    %c0_8 = arith.constant 0 : index
    %4 = vector.load %arg6[%c0_7, %c0_8] : memref<64x32xf32, #tpu.memory_space<vmem>>, vector<64x32xf32>
    %c0_9 = arith.constant 0 : index
    %c0_10 = arith.constant 0 : index
    %5 = vector.load %arg7[%c0_9, %c0_10] : memref<1x32xf32, #tpu.memory_space<vmem>>, vector<1x32xf32>
    %c0_11 = arith.constant 0 : index
    %c0_12 = arith.constant 0 : index
    %6 = vector.load %arg8[%c0_11, %c0_12] : memref<32x8xf32, #tpu.memory_space<vmem>>, vector<32x8xf32>
    %c0_13 = arith.constant 0 : index
    %c0_14 = arith.constant 0 : index
    %7 = vector.load %arg9[%c0_13, %c0_14] : memref<1x8xf32, #tpu.memory_space<vmem>>, vector<1x8xf32>
    %c0_i32 = arith.constant 0 : i32
    %c8_i32 = arith.constant 8 : i32
    %8 = arith.muli %c0_i32, %c8_i32 : i32
    %9 = tpu.assume_multiple %8, 8 : i32
    %10 = arith.index_cast %9 : i32 to index
    %c0_15 = arith.constant 0 : index
    %11 = vector.load %arg1[%10, %c0_15] : memref<8x8xf32, #tpu.memory_space<vmem>>, vector<8x8xf32>
    %cst = arith.constant dense<0.000000e+00> : vector<8x128xf32>
    %12 = tpu.matmul %11, %0, %cst {dimension_numbers = #tpu.dot_dimension_numbers<[1], [0], [0], [1], [0, 0, 1, 1], [], []>} : vector<8x8xf32>, vector<8x128xf32>, vector<8x128xf32> -> vector<8x128xf32>
    %13 = vector.broadcast %1 : vector<1x128xf32> to vector<8x128xf32>
    %14 = arith.addf %12, %13 : vector<8x128xf32>
    %cst_16 = arith.constant 0.000000e+00 : f32
    %15 = vector.broadcast %cst_16 : f32 to vector<8x128xf32>
    %16 = arith.maximumf %14, %15 : vector<8x128xf32>
    %cst_17 = arith.constant dense<0.000000e+00> : vector<8x64xf32>
    %17 = tpu.matmul %16, %2, %cst_17 {dimension_numbers = #tpu.dot_dimension_numbers<[1], [0], [0], [1], [0, 0, 1, 1], [], []>} : vector<8x128xf32>, vector<128x64xf32>, vector<8x64xf32> -> vector<8x64xf32>
    %18 = vector.broadcast %3 : vector<1x64xf32> to vector<8x64xf32>
    %19 = arith.addf %17, %18 : vector<8x64xf32>
    %cst_18 = arith.constant 0.000000e+00 : f32
    %20 = vector.broadcast %cst_18 : f32 to vector<8x64xf32>
    %21 = arith.maximumf %19, %20 : vector<8x64xf32>
    %cst_19 = arith.constant dense<0.000000e+00> : vector<8x32xf32>
    %22 = tpu.matmul %21, %4, %cst_19 {dimension_numbers = #tpu.dot_dimension_numbers<[1], [0], [0], [1], [0, 0, 1, 1], [], []>} : vector<8x64xf32>, vector<64x32xf32>, vector<8x32xf32> -> vector<8x32xf32>
    %23 = vector.broadcast %5 : vector<1x32xf32> to vector<8x32xf32>
    %24 = arith.addf %22, %23 : vector<8x32xf32>
    %cst_20 = arith.constant 0.000000e+00 : f32
    %25 = vector.broadcast %cst_20 : f32 to vector<8x32xf32>
    %26 = arith.maximumf %24, %25 : vector<8x32xf32>
    %cst_21 = arith.constant dense<0.000000e+00> : vector<8x8xf32>
    %27 = tpu.matmul %26, %6, %cst_21 {dimension_numbers = #tpu.dot_dimension_numbers<[1], [0], [0], [1], [0, 0, 1, 1], [], []>} : vector<8x32xf32>, vector<32x8xf32>, vector<8x8xf32> -> vector<8x8xf32>
    %28 = vector.broadcast %7 : vector<1x8xf32> to vector<8x8xf32>
    %29 = arith.addf %27, %28 : vector<8x8xf32>
    %30 = arith.index_cast %9 : i32 to index
    %c0_22 = arith.constant 0 : index
    %31 = vector.load %arg10[%30, %c0_22] : memref<8x8xf32, #tpu.memory_space<vmem>>, vector<8x8xf32>
    tpu.vector_store %arg10[%30, %c0_22], %29 {strides = array<i32>} : memref<8x8xf32, #tpu.memory_space<vmem>>, vector<8x8xf32>,
    %c1_i32 = arith.constant 1 : i32
    return
  }
  func.func @transform_0(%arg0: i32) -> (i32, i32) {
    %c0_i32 = arith.constant 0 : i32
    %c0_i32_0 = arith.constant 0 : i32
    return %arg0, %c0_i32 : i32, i32
  }
  func.func @transform_1(%arg0: i32) -> (i32, i32) {
    %c0_i32 = arith.constant 0 : i32
    %c0_i32_0 = arith.constant 0 : i32
    %c0_i32_1 = arith.constant 0 : i32
    return %c0_i32, %c0_i32_0 : i32, i32
  }
  func.func @transform_2(%arg0: i32) -> (i32, i32) {
    %c0_i32 = arith.constant 0 : i32
    %c0_i32_0 = arith.constant 0 : i32
    %c0_i32_1 = arith.constant 0 : i32
    return %c0_i32, %c0_i32_0 : i32, i32
  }
  func.func @transform_3(%arg0: i32) -> (i32, i32) {
    %c0_i32 = arith.constant 0 : i32
    %c0_i32_0 = arith.constant 0 : i32
    %c0_i32_1 = arith.constant 0 : i32
    return %c0_i32, %c0_i32_0 : i32, i32
  }
  func.func @transform_4(%arg0: i32) -> (i32, i32) {
    %c0_i32 = arith.constant 0 : i32
    %c0_i32_0 = arith.constant 0 : i32
    %c0_i32_1 = arith.constant 0 : i32
    return %c0_i32, %c0_i32_0 : i32, i32
  }
  func.func @transform_5(%arg0: i32) -> (i32, i32) {
    %c0_i32 = arith.constant 0 : i32
    %c0_i32_0 = arith.constant 0 : i32
    %c0_i32_1 = arith.constant 0 : i32
    return %c0_i32, %c0_i32_0 : i32, i32
  }
  func.func @transform_6(%arg0: i32) -> (i32, i32) {
    %c0_i32 = arith.constant 0 : i32
    %c0_i32_0 = arith.constant 0 : i32
    %c0_i32_1 = arith.constant 0 : i32
    return %c0_i32, %c0_i32_0 : i32, i32
  }
  func.func @transform_7(%arg0: i32) -> (i32, i32) {
    %c0_i32 = arith.constant 0 : i32
    %c0_i32_0 = arith.constant 0 : i32
    %c0_i32_1 = arith.constant 0 : i32
    return %c0_i32, %c0_i32_0 : i32, i32
  }
  func.func @transform_8(%arg0: i32) -> (i32, i32) {
    %c0_i32 = arith.constant 0 : i32
    %c0_i32_0 = arith.constant 0 : i32
    %c0_i32_1 = arith.constant 0 : i32
    return %c0_i32, %c0_i32_0 : i32, i32
  }
  func.func @transform_9(%arg0: i32) -> (i32, i32) {
    %c0_i32 = arith.constant 0 : i32
    %c0_i32_0 = arith.constant 0 : i32
    return %arg0, %c0_i32 : i32, i32
  }
}

</mosaic_0001>

<llo_original>
// kernel: tpu_custom_call.1
$region0: #{tpu_custom_call.1}
  #allocation0 [shape = 'u32[]', space=smem, size = 0x4, offset = 0x4, fixed_abs, tag = 'smem constant byte address 0x4 - core index']
  #allocation1 [shape = 'u32[144,128]{1,0:T(1,128)}', space=vmem, size = 0x12000, scoped, tag = 'internal scratch']
  %s0 = inlined_call_operand.vmem [shape: f32[8,8], index: 0, kind: input, shape index: {}]
  %s1 = inlined_call_operand.vmem [shape: f32[8,128], index: 1, kind: input, shape index: {}]
  %s2 = inlined_call_operand.vmem [shape: f32[1,128], index: 2, kind: input, shape index: {}]
  %s3 = inlined_call_operand.vmem [shape: f32[128,64], index: 3, kind: input, shape index: {}]
  %s4 = inlined_call_operand.vmem [shape: f32[1,64], index: 4, kind: input, shape index: {}]
  %s5 = inlined_call_operand.vmem [shape: f32[64,32], index: 5, kind: input, shape index: {}]
  %s6 = inlined_call_operand.vmem [shape: f32[1,32], index: 6, kind: input, shape index: {}]
  %s7 = inlined_call_operand.vmem [shape: f32[32,8], index: 7, kind: input, shape index: {}]
  %s8 = inlined_call_operand.vmem [shape: f32[1,8], index: 8, kind: input, shape index: {}]
  %s9 = inlined_call_operand.hbm [shape: f32[8,8], index: 9, kind: output, shape index: {}]
  %s10 = sld [smem:[#allocation0]]
  $region46: #{tpu_custom_call.1} parent=0
    _
  %s12 = ssub.s32 1, %s10
  %s13 = scalar_select 0, %s12, %s10
  $region1: #{tpu_custom_call.1} parent=0
    #allocation2 [shape = 'u8[4096]{0}', space=vmem, size = 0x1000, scoped, tag = 'output window, operand 0, single buffered']
    #allocation3 [shape = 's32[1]{0}', space=sflag, size = 0x4, scoped, tag = 'scoped memory for tpu_custom_call.1']
    %14 = vsyncpa [#allocation3], 0
    // Predicated region
    $region2: #{tpu_custom_call.1} parent=1 // pred_check
      _
    $region3: #{tpu_custom_call.1} parent=1 // pred_check_branch
      %16 = sbr.rel (0) target = $region5
    $region4: #{tpu_custom_call.1} parent=1 // pred_region
      _
    $region5: #{tpu_custom_call.1} parent=1 // pred_fallthru
      _
    // Predicated region
    $region6: #{tpu_custom_call.1} parent=1 // pred_check
      _
    $region7: #{tpu_custom_call.1} parent=1 // pred_check_branch
      %18 = sbr.rel (0) target = $region9
    $region8: #{tpu_custom_call.1} parent=1 // pred_region
      _
    $region9: #{tpu_custom_call.1} parent=1 // pred_fallthru
      _
    // Predicated region
    $region10: #{tpu_custom_call.1} parent=1 // pred_check
      _
    $region11: #{tpu_custom_call.1} parent=1 // pred_check_branch
      %20 = sbr.rel (0) target = $region13
    $region12: #{tpu_custom_call.1} parent=1 // pred_region
      _
    $region13: #{tpu_custom_call.1} parent=1 // pred_fallthru
      _
    // Predicated region
    $region14: #{tpu_custom_call.1} parent=1 // pred_check
      _
    $region15: #{tpu_custom_call.1} parent=1 // pred_check_branch
      %22 = sbr.rel (0) target = $region17
    $region16: #{tpu_custom_call.1} parent=1 // pred_region
      _
    $region17: #{tpu_custom_call.1} parent=1 // pred_fallthru
      _
    // Predicated region
    $region18: #{tpu_custom_call.1} parent=1 // pred_check
      _
    $region19: #{tpu_custom_call.1} parent=1 // pred_check_branch
      %24 = sbr.rel (0) target = $region21
    $region20: #{tpu_custom_call.1} parent=1 // pred_region
      _
    $region21: #{tpu_custom_call.1} parent=1 // pred_fallthru
      _
    // Predicated region
    $region22: #{tpu_custom_call.1} parent=1 // pred_check
      _
    $region23: #{tpu_custom_call.1} parent=1 // pred_check_branch
      %26 = sbr.rel (0) target = $region25
    $region24: #{tpu_custom_call.1} parent=1 // pred_region
      _
    $region25: #{tpu_custom_call.1} parent=1 // pred_fallthru
      _
    // Predicated region
    $region26: #{tpu_custom_call.1} parent=1 // pred_check
      _
    $region27: #{tpu_custom_call.1} parent=1 // pred_check_branch
      %28 = sbr.rel (0) target = $region29
    $region28: #{tpu_custom_call.1} parent=1 // pred_region
      _
    $region29: #{tpu_custom_call.1} parent=1 // pred_fallthru
      _
    // Predicated region
    $region30: #{tpu_custom_call.1} parent=1 // pred_check
      _
    $region31: #{tpu_custom_call.1} parent=1 // pred_check_branch
      %30 = sbr.rel (0) target = $region33
    $region32: #{tpu_custom_call.1} parent=1 // pred_region
      _
    $region33: #{tpu_custom_call.1} parent=1 // pred_fallthru
      _
    // Predicated region
    $region34: #{tpu_custom_call.1} parent=1 // pred_check
      _
    $region35: #{tpu_custom_call.1} parent=1 // pred_check_branch
      %32 = sbr.rel (0) target = $region37
    $region36: #{tpu_custom_call.1} parent=1 // pred_region
      _
    $region37: #{tpu_custom_call.1} parent=1 // pred_fallthru
      _
    %v33 = vld [vmem:[%s1] sm:$0xff]
    %v34 = vld [vmem:[%s2] sm:$0x1]
    %v35 = vld [vmem:[%s3] sm:$0xff]
    %v36 = vld [vmem:[%s3 + $0x8] sm:$0xff]
    %v37 = vld [vmem:[%s3 + $0x10] sm:$0xff]
    %v38 = vld [vmem:[%s3 + $0x18] sm:$0xff]
    %v39 = vld [vmem:[%s3 + $0x20] sm:$0xff]
    %v40 = vld [vmem:[%s3 + $0x28] sm:$0xff]
    %v41 = vld [vmem:[%s3 + $0x30] sm:$0xff]
    %v42 = vld [vmem:[%s3 + $0x38] sm:$0xff]
    %v43 = vld [vmem:[%s3 + $0x40] sm:$0xff]
    %v44 = vld [vmem:[%s3 + $0x48] sm:$0xff]
    %v45 = vld [vmem:[%s3 + $0x50] sm:$0xff]
    %v46 = vld [vmem:[%s3 + $0x58] sm:$0xff]
    %v47 = vld [vmem:[%s3 + $0x60] sm:$0xff]
    %v48 = vld [vmem:[%s3 + $0x68] sm:$0xff]
    %v49 = vld [vmem:[%s3 + $0x70] sm:$0xff]
    %v50 = vld [vmem:[%s3 + $0x78] sm:$0xff]
    %v51 = vld [vmem:[%s4] sm:$0x1]
    %v52 = vld [vmem:[%s5] sm:$0xff]
    %v53 = vld [vmem:[%s5 + $0x8] sm:$0xff]
    %v54 = vld [vmem:[%s5 + $0x10] sm:$0xff]
    %v55 = vld [vmem:[%s5 + $0x18] sm:$0xff]
    %v56 = vld [vmem:[%s5 + $0x20] sm:$0xff]
    %v57 = vld [vmem:[%s5 + $0x28] sm:$0xff]
    %v58 = vld [vmem:[%s5 + $0x30] sm:$0xff]
    %v59 = vld [vmem:[%s5 + $0x38] sm:$0xff]
    %v60 = vld [vmem:[%s6] sm:$0x1]
    %v61 = vld [vmem:[%s7] sm:$0xff]
    %v62 = vld [vmem:[%s7 + $0x8] sm:$0xff]
    %v63 = vld [vmem:[%s7 + $0x10] sm:$0xff]
    %v64 = vld [vmem:[%s7 + $0x18] sm:$0xff]
    %v65 = vld [vmem:[%s8] sm:$0x1]
    %v66 = vld [vmem:[%s0] sm:$0xff]
    %v68 = vlaneseq
    %v69 = vshrl.u32 %v68, 7
    %v70 = vsub.s32 0, %v69
    %v71 = vrot.slane %v34, %v70
    %vm73 = vcmask 64512
    %v75 = vsel %vm73, %v66, 0
    %77 = vmatprep.subr.mxu0 0.0
    %78 = vmatpush1.msra.mxu0 %v33
    %79 = vmatprep.subr.mxu0 0.0
    %80 = vmatpush1.msra.mxu0 0.0
    %81 = vmatprep.subr.mxu0 0.0
    %82 = vmatpush1.msra.mxu0 0.0
    %83 = vmatprep.subr.mxu0 0.0
    %84 = vmatpush1.msra.mxu0 0.0
    %85 = vmatprep.subr.mxu0 0.0
    %86 = vmatpush1.msra.mxu0 0.0
    %87 = vmatprep.subr.mxu0 0.0
    %88 = vmatpush1.msra.mxu0 0.0
    %89 = vmatprep.subr.mxu0 0.0
    %90 = vmatpush1.msra.mxu0 0.0
    %91 = vmatprep.subr.mxu0 0.0
    %92 = vmatpush1.msra.mxu0 0.0
    %93 = vmatprep.subr.mxu0 0.0
    %94 = vmatpush1.msra.mxu0 0.0
    %95 = vmatprep.subr.mxu0 0.0
    %96 = vmatpush1.msra.mxu0 0.0
    %97 = vmatprep.subr.mxu0 0.0
    %98 = vmatpush1.msra.mxu0 0.0
    %99 = vmatprep.subr.mxu0 0.0
    %100 = vmatpush1.msra.mxu0 0.0
    %101 = vmatprep.subr.mxu0 0.0
    %102 = vmatpush1.msra.mxu0 0.0
    %103 = vmatprep.subr.mxu0 0.0
    %104 = vmatpush1.msra.mxu0 0.0
    %105 = vmatprep.subr.mxu0 0.0
    %106 = vmatpush1.msra.mxu0 0.0
    %107 = vmatprep.subr.mxu0 0.0
    %108 = vmatpush1.msra.mxu0 0.0
    %109 = vmatprep.subr.mxu0 0.0
    %110 = vmatpush1.msra.mxu0 0.0
    %111 = vmatprep.subr.mxu0 0.0
    %112 = vmatpush1.msra.mxu0 0.0
    %113 = vmatprep.subr.mxu0 0.0
    %114 = vmatpush1.msra.mxu0 0.0
    %115 = vmatprep.subr.mxu0 0.0
    %116 = vmatpush1.msra.mxu0 0.0
    %117 = vmatprep.subr.mxu0 0.0
    %118 = vmatpush1.msra.mxu0 0.0
    %119 = vmatprep.subr.mxu0 0.0
    %120 = vmatpush1.msra.mxu0 0.0
    %121 = vmatprep.subr.mxu0 0.0
    %122 = vmatpush1.msra.mxu0 0.0
    %123 = vmatprep.subr.mxu0 0.0
    %124 = vmatpush1.msra.mxu0 0.0
    %125 = vmatprep.subr.mxu0 0.0
    %126 = vmatpush1.msra.mxu0 0.0
    %127 = vmatprep.subr.mxu0 0.0
    %128 = vmatpush1.msra.mxu0 0.0
    %129 = vmatprep.subr.mxu0 0.0
    %130 = vmatpush1.msra.mxu0 0.0
    %131 = vmatprep.subr.mxu0 0.0
    %132 = vmatpush1.msra.mxu0 0.0
    %133 = vmatprep.subr.mxu0 0.0
    %134 = vmatpush1.msra.mxu0 0.0
    %135 = vmatprep.subr.mxu0 0.0
    %136 = vmatpush1.msra.mxu0 0.0
    %137 = vmatprep.subr.mxu0 0.0
    %138 = vmatpush1.msra.mxu0 0.0
    %139 = vmatprep.subr.mxu0 0.0
    %140 = vmatpush1.msra.mxu0 0.0
    %141 = vmatprep.mubr.f32.mxu0 0.0
    %142 = vmatmul.mubr.f32.gmra.mrb[0].mxu0 %v75
    %v143 = vpop.f32.mrb[0].mxu0
    %v144 = vadd.f32 %v71, %v143
    %v145 = vpop.f32.mrb[0].mxu0
    %146 = vdwg.mxu0
    %v147 = vmax.f32 %v144, 0.0
    %v149 = vlaneseq
    %v150 = vshrl.u32 %v149, 7
    %v151 = vsub.s32 0, %v150
    %v152 = vrot.slane %v51, %v151
    %154 = vmatprep.subr.mxu0 0.0
    %155 = vmatpush1.msra.mxu0 %v35
    %156 = vmatprep.subr.mxu0 0.0
    %157 = vmatpush1.msra.mxu0 %v36
    %158 = vmatprep.subr.mxu0 0.0
    %159 = vmatpush1.msra.mxu0 %v37
    %160 = vmatprep.subr.mxu0 0.0
    %161 = vmatpush1.msra.mxu0 %v38
    %162 = vmatprep.subr.mxu0 0.0
    %163 = vmatpush1.msra.mxu0 %v39
    %164 = vmatprep.subr.mxu0 0.0
    %165 = vmatpush1.msra.mxu0 %v40
    %166 = vmatprep.subr.mxu0 0.0
    %167 = vmatpush1.msra.mxu0 %v41
    %168 = vmatprep.subr.mxu0 0.0
    %169 = vmatpush1.msra.mxu0 %v42
    %170 = vmatprep.subr.mxu0 0.0
    %171 = vmatpush1.msra.mxu0 %v43
    %172 = vmatprep.subr.mxu0 0.0
    %173 = vmatpush1.msra.mxu0 %v44
    %174 = vmatprep.subr.mxu0 0.0
    %175 = vmatpush1.msra.mxu0 %v45
    %176 = vmatprep.subr.mxu0 0.0
    %177 = vmatpush1.msra.mxu0 %v46
    %178 = vmatprep.subr.mxu0 0.0
    %179 = vmatpush1.msra.mxu0 %v47
    %180 = vmatprep.subr.mxu0 0.0
    %181 = vmatpush1.msra.mxu0 %v48
    %182 = vmatprep.subr.mxu0 0.0
    %183 = vmatpush1.msra.mxu0 %v49
    %184 = vmatprep.subr.mxu0 0.0
    %185 = vmatpush1.msra.mxu0 %v50
    %186 = vmatprep.subr.mxu0 0.0
    %187 = vmatpush1.msra.mxu0 0.0
    %188 = vmatprep.subr.mxu0 0.0
    %189 = vmatpush1.msra.mxu0 0.0
    %190 = vmatprep.subr.mxu0 0.0
    %191 = vmatpush1.msra.mxu0 0.0
    %192 = vmatprep.subr.mxu0 0.0
    %193 = vmatpush1.msra.mxu0 0.0
    %194 = vmatprep.subr.mxu0 0.0
    %195 = vmatpush1.msra.mxu0 0.0
    %196 = vmatprep.subr.mxu0 0.0
    %197 = vmatpush1.msra.mxu0 0.0
    %198 = vmatprep.subr.mxu0 0.0
    %199 = vmatpush1.msra.mxu0 0.0
    %200 = vmatprep.subr.mxu0 0.0
    %201 = vmatpush1.msra.mxu0 0.0
    %202 = vmatprep.subr.mxu0 0.0
    %203 = vmatpush1.msra.mxu0 0.0
    %204 = vmatprep.subr.mxu0 0.0
    %205 = vmatpush1.msra.mxu0 0.0
    %206 = vmatprep.subr.mxu0 0.0
    %207 = vmatpush1.msra.mxu0 0.0
    %208 = vmatprep.subr.mxu0 0.0
    %209 = vmatpush1.msra.mxu0 0.0
    %210 = vmatprep.subr.mxu0 0.0
    %211 = vmatpush1.msra.mxu0 0.0
    %212 = vmatprep.subr.mxu0 0.0
    %213 = vmatpush1.msra.mxu0 0.0
    %214 = vmatprep.subr.mxu0 0.0
    %215 = vmatpush1.msra.mxu0 0.0
    %216 = vmatprep.subr.mxu0 0.0
    %217 = vmatpush1.msra.mxu0 0.0
    %218 = vmatprep.mubr.f32.mxu0 0.0
    %219 = vmatmul.mubr.f32.gmra.mrb[0].mxu0 %v147
    %v220 = vpop.f32.mrb[0].mxu0
    %v221 = vadd.f32 %v152, %v220
    %v222 = vpop.f32.mrb[0].mxu0
    %223 = vdwg.mxu0
    %v224 = vmax.f32 %v221, 0.0
    %v226 = vlaneseq
    %v227 = vshrl.u32 %v226, 7
    %v228 = vsub.s32 0, %v227
    %v229 = vrot.slane %v60, %v228
    %vm231 = vcmask 523264
    %v233 = vsel %vm231, %v224, 0
    %235 = vmatprep.subr.mxu0 0.0
    %236 = vmatpush1.msra.mxu0 %v52
    %237 = vmatprep.subr.mxu0 0.0
    %238 = vmatpush1.msra.mxu0 %v53
    %239 = vmatprep.subr.mxu0 0.0
    %240 = vmatpush1.msra.mxu0 %v54
    %241 = vmatprep.subr.mxu0 0.0
    %242 = vmatpush1.msra.mxu0 %v55
    %243 = vmatprep.subr.mxu0 0.0
    %244 = vmatpush1.msra.mxu0 %v56
    %245 = vmatprep.subr.mxu0 0.0
    %246 = vmatpush1.msra.mxu0 %v57
    %247 = vmatprep.subr.mxu0 0.0
    %248 = vmatpush1.msra.mxu0 %v58
    %249 = vmatprep.subr.mxu0 0.0
    %250 = vmatpush1.msra.mxu0 %v59
    %251 = vmatprep.subr.mxu0 0.0
    %252 = vmatpush1.msra.mxu0 0.0
    %253 = vmatprep.subr.mxu0 0.0
    %254 = vmatpush1.msra.mxu0 0.0
    %255 = vmatprep.subr.mxu0 0.0
    %256 = vmatpush1.msra.mxu0 0.0
    %257 = vmatprep.subr.mxu0 0.0
    %258 = vmatpush1.msra.mxu0 0.0
    %259 = vmatprep.subr.mxu0 0.0
    %260 = vmatpush1.msra.mxu0 0.0
    %261 = vmatprep.subr.mxu0 0.0
    %262 = vmatpush1.msra.mxu0 0.0
    %263 = vmatprep.subr.mxu0 0.0
    %264 = vmatpush1.msra.mxu0 0.0
    %265 = vmatprep.subr.mxu0 0.0
    %266 = vmatpush1.msra.mxu0 0.0
    %267 = vmatprep.subr.mxu0 0.0
    %268 = vmatpush1.msra.mxu0 0.0
    %269 = vmatprep.subr.mxu0 0.0
    %270 = vmatpush1.msra.mxu0 0.0
    %271 = vmatprep.subr.mxu0 0.0
    %272 = vmatpush1.msra.mxu0 0.0
    %273 = vmatprep.subr.mxu0 0.0
    %274 = vmatpush1.msra.mxu0 0.0
    %275 = vmatprep.subr.mxu0 0.0
    %276 = vmatpush1.msra.mxu0 0.0
    %277 = vmatprep.subr.mxu0 0.0
    %278 = vmatpush1.msra.mxu0 0.0
    %279 = vmatprep.subr.mxu0 0.0
    %280 = vmatpush1.msra.mxu0 0.0
    %281 = vmatprep.subr.mxu0 0.0
    %282 = vmatpush1.msra.mxu0 0.0
    %283 = vmatprep.subr.mxu0 0.0
    %284 = vmatpush1.msra.mxu0 0.0
    %285 = vmatprep.subr.mxu0 0.0
    %286 = vmatpush1.msra.mxu0 0.0
    %287 = vmatprep.subr.mxu0 0.0
    %288 = vmatpush1.msra.mxu0 0.0
    %289 = vmatprep.subr.mxu0 0.0
    %290 = vmatpush1.msra.mxu0 0.0
    %291 = vmatprep.subr.mxu0 0.0
    %292 = vmatpush1.msra.mxu0 0.0
    %293 = vmatprep.subr.mxu0 0.0
    %294 = vmatpush1.msra.mxu0 0.0
    %295 = vmatprep.subr.mxu0 0.0
    %296 = vmatpush1.msra.mxu0 0.0
    %297 = vmatprep.subr.mxu0 0.0
    %298 = vmatpush1.msra.mxu0 0.0
    %299 = vmatprep.mubr.f32.mxu0 0.0
    %300 = vmatmul.mubr.f32.gmra.mrb[0].mxu0 %v233
    %v301 = vpop.f32.mrb[0].mxu0
    %v302 = vadd.f32 %v229, %v301
    %v303 = vpop.f32.mrb[0].mxu0
    %304 = vdwg.mxu0
    %v305 = vmax.f32 %v302, 0.0
    %v307 = vlaneseq
    %v308 = vshrl.u32 %v307, 7
    %v309 = vsub.s32 0, %v308
    %v310 = vrot.slane %v65, %v309
    %vm312 = vcmask 261120
    %v314 = vsel %vm312, %v305, 0
    %316 = vmatprep.subr.mxu0 0.0
    %317 = vmatpush1.msra.mxu0 %v61
    %318 = vmatprep.subr.mxu0 0.0
    %319 = vmatpush1.msra.mxu0 %v62
    %320 = vmatprep.subr.mxu0 0.0
    %321 = vmatpush1.msra.mxu0 %v63
    %322 = vmatprep.subr.mxu0 0.0
    %323 = vmatpush1.msra.mxu0 %v64
    %324 = vmatprep.subr.mxu0 0.0
    %325 = vmatpush1.msra.mxu0 0.0
    %326 = vmatprep.subr.mxu0 0.0
    %327 = vmatpush1.msra.mxu0 0.0
    %328 = vmatprep.subr.mxu0 0.0
    %329 = vmatpush1.msra.mxu0 0.0
    %330 = vmatprep.subr.mxu0 0.0
    %331 = vmatpush1.msra.mxu0 0.0
    %332 = vmatprep.subr.mxu0 0.0
    %333 = vmatpush1.msra.mxu0 0.0
    %334 = vmatprep.subr.mxu0 0.0
    %335 = vmatpush1.msra.mxu0 0.0
    %336 = vmatprep.subr.mxu0 0.0
    %337 = vmatpush1.msra.mxu0 0.0
    %338 = vmatprep.subr.mxu0 0.0
    %339 = vmatpush1.msra.mxu0 0.0
    %340 = vmatprep.subr.mxu0 0.0
    %341 = vmatpush1.msra.mxu0 0.0
    %342 = vmatprep.subr.mxu0 0.0
    %343 = vmatpush1.msra.mxu0 0.0
    %344 = vmatprep.subr.mxu0 0.0
    %345 = vmatpush1.msra.mxu0 0.0
    %346 = vmatprep.subr.mxu0 0.0
    %347 = vmatpush1.msra.mxu0 0.0
    %348 = vmatprep.subr.mxu0 0.0
    %349 = vmatpush1.msra.mxu0 0.0
    %350 = vmatprep.subr.mxu0 0.0
    %351 = vmatpush1.msra.mxu0 0.0
    %352 = vmatprep.subr.mxu0 0.0
    %353 = vmatpush1.msra.mxu0 0.0
    %354 = vmatprep.subr.mxu0 0.0
    %355 = vmatpush1.msra.mxu0 0.0
    %356 = vmatprep.subr.mxu0 0.0
    %357 = vmatpush1.msra.mxu0 0.0
    %358 = vmatprep.subr.mxu0 0.0
    %359 = vmatpush1.msra.mxu0 0.0
    %360 = vmatprep.subr.mxu0 0.0
    %361 = vmatpush1.msra.mxu0 0.0
    %362 = vmatprep.subr.mxu0 0.0
    %363 = vmatpush1.msra.mxu0 0.0
    %364 = vmatprep.subr.mxu0 0.0
    %365 = vmatpush1.msra.mxu0 0.0
    %366 = vmatprep.subr.mxu0 0.0
    %367 = vmatpush1.msra.mxu0 0.0
    %368 = vmatprep.subr.mxu0 0.0
    %369 = vmatpush1.msra.mxu0 0.0
    %370 = vmatprep.subr.mxu0 0.0
    %371 = vmatpush1.msra.mxu0 0.0
    %372 = vmatprep.subr.mxu0 0.0
    %373 = vmatpush1.msra.mxu0 0.0
    %374 = vmatprep.subr.mxu0 0.0
    %375 = vmatpush1.msra.mxu0 0.0
    %376 = vmatprep.subr.mxu0 0.0
    %377 = vmatpush1.msra.mxu0 0.0
    %378 = vmatprep.subr.mxu0 0.0
    %379 = vmatpush1.msra.mxu0 0.0
    %380 = vmatprep.mubr.f32.mxu0 0.0
    %381 = vmatmul.mubr.f32.gmra.mrb[0].mxu0 %v314
    %v382 = vpop.f32.mrb[0].mxu0
    %v383 = vadd.f32 %v310, %v382
    %v384 = vpop.f32.mrb[0].mxu0
    %385 = vdwg.mxu0
    %386 = vst.msk [vmem:[#allocation2] sm:$0xff] %vm73, %v383
    // Predicated region
    $region38: #{tpu_custom_call.1} parent=1 // pred_check
      _
    $region39: #{tpu_custom_call.1} parent=1 // pred_check_branch
      %388 = sbr.rel (0) target = $region41
    $region40: #{tpu_custom_call.1} parent=1 // pred_region
      %s390 = ssub.s32 128, 128
      %391 = vsyncadd [#allocation3], %s390
      %s393 = sshll.u32 [#allocation2], 4
      %s394 = int_to_ptr.vmem [resolvable:$true] %s393
      %396 = dma.vmem_to_hbm [thread:$0]  %s394, 128, %s9, [#allocation3]
    $region41: #{tpu_custom_call.1} parent=1 // pred_fallthru
      _
    // Predicated region
    $region42: #{tpu_custom_call.1} parent=1 // pred_check
      _
    $region43: #{tpu_custom_call.1} parent=1 // pred_check_branch
      %398 = sbr.rel (0) target = $region45
    $region44: #{tpu_custom_call.1} parent=1 // pred_region
      %399 = dma.done [#allocation3], 128
    $region45: #{tpu_custom_call.1} parent=1 // pred_fallthru
      _
    %400 = vsyncpa [#allocation3], 1

</llo_original>
